<compile_context>
chip_gen: v5e
topology: v5e:2x2
jax: 0.10.0
libtpu: 0.0.40
codegen_flags: <defaults>
</compile_context>

<pallas_src>
import math

import jax
import jax.numpy as jnp
from jax import lax
from jax.experimental import pallas as pl
from jax.experimental.pallas import tpu as pltpu

_INV_SQRT2 = 1.0 / math.sqrt(2.0)


def _gelu_exact(x):
    # PyTorch nn.GELU() default: exact erf-based GELU (computed in f32).
    return 0.5 * x * (1.0 + lax.erf(x * _INV_SQRT2))


def ffn_kernel(x_ref, w1_ref, b1_ref, w2_ref, b2_ref, o_ref, acc_ref):
    """One (row-tile, hidden-tile) grid step.

    grid = (M_tiles, H_tiles); the hidden axis is a reduction into acc_ref.
    b1_ref holds the full bias reshaped to (H_tiles, th); b2_ref is (1, D).
    """
    h_idx = pl.program_id(1)

    @pl.when(h_idx == 0)
    def _():
        acc_ref[...] = jnp.zeros_like(acc_ref)

    x = x_ref[...]                                            # (tm, D), compute dtype
    # Layer 1 partial: gelu(x @ W1[:, h_tile] + b1[h_tile])   (f32 accumulation)
    h = jnp.dot(x, w1_ref[...], preferred_element_type=jnp.float32)
    b1_tile = b1_ref[pl.ds(h_idx, 1), :].astype(jnp.float32)  # (1, th), resident
    h = _gelu_exact(h + b1_tile)
    # Layer 2 partial sum: acc += h @ W2[h_tile, :]
    acc_ref[...] += jnp.dot(h.astype(x.dtype), w2_ref[...],
                            preferred_element_type=jnp.float32)

    @pl.when(h_idx == pl.num_programs(1) - 1)
    def _():
        y = acc_ref[...] + b2_ref[...].astype(jnp.float32)
        o_ref[...] = _gelu_exact(y).astype(o_ref.dtype)


def _tpu_vmem_bytes():
    """Physical per-core VMEM; conservative 64 MiB (v7x) if the query fails."""
    try:
        info = pltpu.get_tpu_info()
        cap = getattr(info, "vmem_capacity_bytes", None)
        if cap:
            return int(cap)
    except Exception:
        pass
    return 64 * 1024 * 1024


def _hidden_tile(hidden_dim, th):
    """Largest multiple of 128 that divides hidden_dim and is <= th.

    Falls back to full H only when H itself is not lane-tileable (H % 128 != 0),
    which only happens for tiny models where the W tiles are small anyway.
    """
    if hidden_dim % 128 != 0:
        return hidden_dim
    t = (min(th, hidden_dim) // 128) * 128
    while t >= 128:
        if hidden_dim % t == 0:
            return t
        t -= 128
    return hidden_dim


def ffn_pallas(x, w1, b1, w2, b2, *, tm=None, th=512, compute_dtype=None):
    """x: [..., input_dim]; weights stored as [in, out] (transposed vs torch).

    compute_dtype: optional dtype (e.g. jnp.bfloat16) for x/W1/W2 on the MXU.
    Default None keeps the input dtype (no numerics change); accumulation and
    bias+GELU math are always f32.
    """
    input_dim = x.shape[-1]
    hidden_dim = w1.shape[-1]
    assert x.shape[-1] == w1.shape[0], "input dimension mismatch"

    out_dtype = x.dtype
    cdtype = jnp.dtype(compute_dtype) if compute_dtype is not None else jnp.dtype(x.dtype)
    if cdtype != jnp.dtype(x.dtype):
        x = x.astype(cdtype)
        w1 = w1.astype(cdtype)
        w2 = w2.astype(cdtype)
        # biases stay full precision; the kernel does bias+GELU in f32 anyway.

    lead_shape = x.shape[:-1]
    x2d = x.reshape(-1, input_dim)
    M = x2d.shape[0]

    itemsize = cdtype.itemsize
    out_itemsize = jnp.dtype(out_dtype).itemsize

    # --- per-generation budgets -------------------------------------------
    vmem_cap = _tpu_vmem_bytes()
    headroom = 8 * 1024 * 1024 if vmem_cap <= 64 * 1024 * 1024 else 16 * 1024 * 1024
    vmem_budget = vmem_cap - headroom            # never request beyond physical VMEM

    if tm is None:
        if vmem_cap > 64 * 1024 * 1024:          # v5e / v6e class (128 MiB VMEM)
            tm = 1024 if itemsize <= 2 else 512
        else:                                    # v7x class (64 MiB VMEM)
            tm = 512 if itemsize <= 2 else 256

    # --- hidden tile: exact divisor of H, multiple of 128 lanes -------------
    th_eff = _hidden_tile(hidden_dim, th)
    h_tiles = hidden_dim // th_eff

    # --- row tile ------------------------------------------------------------
    tm_eff = min(tm, M)
    # Keep >= 2 row tiles for megacore / v7x dual-TC sharding when M is large
    # enough; a single row tile idles one core.
    if pl.cdiv(M, tm_eff) == 1 and M >= 256:
        tm_eff = ((M + 1) // 2 + 7) // 8 * 8

    def vmem_estimate(t_m):
        return (2 * itemsize * t_m * input_dim            # x (double-buffered)
                + 2 * out_itemsize * t_m * input_dim      # out (double-buffered)
                + 2 * itemsize * input_dim * th_eff       # W1 tile (double-buffered)
                + 2 * itemsize * th_eff * input_dim       # W2 tile (double-buffered)
                + 4 * t_m * input_dim                     # f32 accumulator scratch
                + 4 * t_m * th_eff                        # f32 hidden block
                + 4 * (hidden_dim + input_dim))           # resident biases

    # Shrink tm until the working set fits the physical budget.
    while vmem_estimate(tm_eff) > vmem_budget and tm_eff > 128:
        tm_eff = max(128, (tm_eff // 2 + 7) // 8 * 8)

    m_tiles = pl.cdiv(M, tm_eff)                 # last row block may be partial

    vmem_limit = None
    est = vmem_estimate(tm_eff)
    if est > 32 * 1024 * 1024:
        vmem_limit = min(int(est * 1.25), vmem_budget)

    # Biases: b1 fully resident as (h_tiles, th_eff), sliced in-kernel; b2 as (1, D).
    b1_2d = b1.reshape(h_tiles, th_eff)
    b2_2d = b2.reshape(1, input_dim)

    cost = pl.CostEstimate(
        flops=4 * M * input_dim * hidden_dim,
        transcendentals=M * (hidden_dim + input_dim),
        bytes_accessed=(out_itemsize * 2 * M * input_dim
                        + itemsize * 2 * m_tiles * input_dim * hidden_dim),
    )

    # NOTE: on v7x a further ~few-% can come from pl.Buffered(3) on the weight
    # specs once tm/th are fixed for a given shape; left at default depth here
    # to keep the VMEM accounting exact across generations.
    out = pl.pallas_call(
        ffn_kernel,
        out_shape=jax.ShapeDtypeStruct((M, input_dim), out_dtype),
        grid_spec=pltpu.PrefetchScalarGridSpec(
            num_scalar_prefetch=0,
            grid=(m_tiles, h_tiles),
            in_specs=[
                pl.BlockSpec((tm_eff, input_dim), lambda i, h: (i, 0)),   # x rows
                pl.BlockSpec((input_dim, th_eff), lambda i, h: (0, h)),   # W1 col tile
                pl.BlockSpec((h_tiles, th_eff), lambda i, h: (0, 0)),     # b1 (resident)
                pl.BlockSpec((th_eff, input_dim), lambda i, h: (h, 0)),   # W2 row tile
                pl.BlockSpec((1, input_dim), lambda i, h: (0, 0)),        # b2 (resident)
            ],
            out_specs=pl.BlockSpec((tm_eff, input_dim), lambda i, h: (i, 0)),
            scratch_shapes=[pltpu.VMEM((tm_eff, input_dim), jnp.float32)],
        ),
        compiler_params=pltpu.CompilerParams(
            dimension_semantics=("parallel", "arbitrary"),
            vmem_limit_bytes=vmem_limit,
        ),
        cost_estimate=cost,
    )(x2d, w1, b1_2d, w2, b2_2d)

    return out.reshape(*lead_shape, input_dim)


def init_ffn_params(key, input_dim, hidden_dim, dtype=jnp.float32):
    """Deterministic init mimicking nn.Linear's U(-1/sqrt(fan_in), 1/sqrt(fan_in))."""
    k1, k2, k3, k4 = jax.random.split(key, 4)
    bound1 = 1.0 / math.sqrt(input_dim)
    bound2 = 1.0 / math.sqrt(hidden_dim)
    # Stored as [in, out] so the kernel does x @ W directly.
    w1 = jax.random.uniform(k1, (input_dim, hidden_dim), dtype, -bound1, bound1)
    b1 = jax.random.uniform(k2, (hidden_dim,), dtype, -bound1, bound1)
    w2 = jax.random.uniform(k3, (hidden_dim, input_dim), dtype, -bound2, bound2)
    b2 = jax.random.uniform(k4, (input_dim,), dtype, -bound2, bound2)
    return w1, b1, w2, b2


def _ref_ffn(x, w1, b1, w2, b2):
    return _gelu_exact(_gelu_exact(x @ w1 + b1) @ w2 + b2)


if __name__ == "__main__":
    key = jax.random.PRNGKey(0)

    # Case 1: small lane-dense shapes (single row / hidden tile).
    input_dim, hidden_dim = 128, 256
    batch, seq = 2, 8
    kx, kp, kx2, kp2 = jax.random.split(key, 4)
    x = jax.random.normal(kx, (batch, seq, input_dim), jnp.float32)
    w1, b1, w2, b2 = init_ffn_params(kp, input_dim, hidden_dim)

    out = jax.block_until_ready(ffn_pallas(x, w1, b1, w2, b2))
    ref = _ref_ffn(x, w1, b1, w2, b2)
    assert out.shape == x.shape
    assert jnp.allclose(out, ref, atol=1e-4, rtol=1e-4)

    # Case 2: multiple row tiles (partial last block) and multiple hidden tiles.
    input_dim2, hidden_dim2 = 256, 512
    batch2, seq2 = 3, 17                       # M = 51 rows, partial last tile
    x2 = jax.random.normal(kx2, (batch2, seq2, input_dim2), jnp.float32)
    w1b, b1b, w2b, b2b = init_ffn_params(kp2, input_dim2, hidden_dim2)

    out2 = jax.block_until_ready(
        ffn_pallas(x2, w1b, b1b, w2b, b2b, tm=32, th=256))
    ref2 = _ref_ffn(x2, w1b, b1b, w2b, b2b)
    assert out2.shape == x2.shape
    assert jnp.allclose(out2, ref2, atol=1e-4, rtol=1e-4)

    print("KERNEL_OK")
</pallas_src>

<mosaic_0001>
module attributes {stable_mosaic.version = 11 : i64} {
  func.func @ffn_kernel(%arg0: i32, %arg1: i32, %arg2: memref<16x128xf32, #tpu.memory_space<vmem>>, %arg3: memref<128x256xf32, #tpu.memory_space<vmem>>, %arg4: memref<1x256xf32, #tpu.memory_space<vmem>>, %arg5: memref<256x128xf32, #tpu.memory_space<vmem>>, %arg6: memref<1x128xf32, #tpu.memory_space<vmem>>, %arg7: memref<16x128xf32, #tpu.memory_space<vmem>>, %arg8: memref<16x128xf32, #tpu.memory_space<vmem>>) attributes {dimension_semantics = [#tpu.dimension_semantics<parallel>, #tpu.dimension_semantics<arbitrary>], iteration_bounds = array<i64: 1, 1>, scalar_prefetch = 0 : i64, scratch_operands = 1 : i64, tpu.core_type = #tpu.core_type<tc>, window_params = [{transform_indices = @transform_0, window_bounds = array<i64: 16, 128>}, {transform_indices = @transform_1, window_bounds = array<i64: 128, 256>}, {pipeline_mode = #tpu.pipeline_mode<synchronous>, transform_indices = @transform_2, window_bounds = array<i64: 1, 256>}, {transform_indices = @transform_3, window_bounds = array<i64: 256, 128>}, {pipeline_mode = #tpu.pipeline_mode<synchronous>, transform_indices = @transform_4, window_bounds = array<i64: 1, 128>}, {transform_indices = @transform_5, window_bounds = array<i64: 16, 128>}]} {
    %c0_i32 = arith.constant 0 : i32
    %0 = arith.cmpi eq, %arg1, %c0_i32 : i32
    %1 = arith.extui %0 : i1 to i32
    %c0_i32_0 = arith.constant 0 : i32
    %2 = arith.cmpi ne, %1, %c0_i32_0 : i32
    scf.if %2 {
      %cst_17 = arith.constant 0.000000e+00 : f32
      %26 = vector.broadcast %cst_17 : f32 to vector<16x128xf32>
      %c0_18 = arith.constant 0 : index
      %c0_19 = arith.constant 0 : index
      %27 = vector.load %arg8[%c0_18, %c0_19] : memref<16x128xf32, #tpu.memory_space<vmem>>, vector<16x128xf32>
      tpu.vector_store %arg8[%c0_18, %c0_19], %26 {strides = array<i32>} : memref<16x128xf32, #tpu.memory_space<vmem>>, vector<16x128xf32>,
    } else {
    }
    %c0 = arith.constant 0 : index
    %c0_1 = arith.constant 0 : index
    %3 = vector.load %arg2[%c0, %c0_1] : memref<16x128xf32, #tpu.memory_space<vmem>>, vector<16x128xf32>
    %c0_2 = arith.constant 0 : index
    %c0_3 = arith.constant 0 : index
    %4 = vector.load %arg3[%c0_2, %c0_3] : memref<128x256xf32, #tpu.memory_space<vmem>>, vector<128x256xf32>
    %cst = arith.constant dense<0.000000e+00> : vector<16x256xf32>
    %5 = tpu.matmul %3, %4, %cst {dimension_numbers = #tpu.dot_dimension_numbers<[1], [0], [0], [1], [0, 0, 1, 1], [], []>} : vector<16x128xf32>, vector<128x256xf32>, vector<16x256xf32> -> vector<16x256xf32>
    %6 = arith.index_cast %arg1 : i32 to index
    %c0_4 = arith.constant 0 : index
    %7 = vector.load %arg4[%6, %c0_4] : memref<1x256xf32, #tpu.memory_space<vmem>>, vector<1x256xf32>
    %8 = vector.broadcast %7 : vector<1x256xf32> to vector<16x256xf32>
    %9 = arith.addf %5, %8 : vector<16x256xf32>
    %cst_5 = arith.constant 5.000000e-01 : f32
    %10 = vector.broadcast %cst_5 : f32 to vector<16x256xf32>
    %11 = arith.mulf %10, %9 : vector<16x256xf32>
    %cst_6 = arith.constant 0.707106769 : f32
    %12 = vector.broadcast %cst_6 : f32 to vector<16x256xf32>
    %13 = arith.mulf %9, %12 : vector<16x256xf32>
    %14 = math.erf %13 : vector<16x256xf32>
    %cst_7 = arith.constant 1.000000e+00 : f32
    %15 = vector.broadcast %cst_7 : f32 to vector<16x256xf32>
    %16 = arith.addf %15, %14 : vector<16x256xf32>
    %17 = arith.mulf %11, %16 : vector<16x256xf32>
    %c0_8 = arith.constant 0 : index
    %c0_9 = arith.constant 0 : index
    %18 = vector.load %arg8[%c0_8, %c0_9] : memref<16x128xf32, #tpu.memory_space<vmem>>, vector<16x128xf32>
    %c0_10 = arith.constant 0 : index
    %c0_11 = arith.constant 0 : index
    %19 = vector.load %arg5[%c0_10, %c0_11] : memref<256x128xf32, #tpu.memory_space<vmem>>, vector<256x128xf32>
    %cst_12 = arith.constant dense<0.000000e+00> : vector<16x128xf32>
    %20 = tpu.matmul %17, %19, %cst_12 {dimension_numbers = #tpu.dot_dimension_numbers<[1], [0], [0], [1], [0, 0, 1, 1], [], []>} : vector<16x256xf32>, vector<256x128xf32>, vector<16x128xf32> -> vector<16x128xf32>
    %21 = arith.addf %18, %20 : vector<16x128xf32>
    %c0_13 = arith.constant 0 : index
    %c0_14 = arith.constant 0 : index
    %22 = vector.load %arg8[%c0_13, %c0_14] : memref<16x128xf32, #tpu.memory_space<vmem>>, vector<16x128xf32>
    tpu.vector_store %arg8[%c0_13, %c0_14], %21 {strides = array<i32>} : memref<16x128xf32, #tpu.memory_space<vmem>>, vector<16x128xf32>,
    %c0_i32_15 = arith.constant 0 : i32
    %23 = arith.cmpi eq, %arg1, %c0_i32_15 : i32
    %24 = arith.extui %23 : i1 to i32
    %c0_i32_16 = arith.constant 0 : i32
    %25 = arith.cmpi ne, %24, %c0_i32_16 : i32
    scf.if %25 {
      %c0_17 = arith.constant 0 : index
      %c0_18 = arith.constant 0 : index
      %26 = vector.load %arg8[%c0_17, %c0_18] : memref<16x128xf32, #tpu.memory_space<vmem>>, vector<16x128xf32>
      %c0_19 = arith.constant 0 : index
      %c0_20 = arith.constant 0 : index
      %27 = vector.load %arg6[%c0_19, %c0_20] : memref<1x128xf32, #tpu.memory_space<vmem>>, vector<1x128xf32>
      %28 = vector.broadcast %27 : vector<1x128xf32> to vector<16x128xf32>
      %29 = arith.addf %26, %28 : vector<16x128xf32>
      %cst_21 = arith.constant 5.000000e-01 : f32
      %30 = vector.broadcast %cst_21 : f32 to vector<16x128xf32>
      %31 = arith.mulf %30, %29 : vector<16x128xf32>
      %cst_22 = arith.constant 0.707106769 : f32
      %32 = vector.broadcast %cst_22 : f32 to vector<16x128xf32>
      %33 = arith.mulf %29, %32 : vector<16x128xf32>
      %34 = math.erf %33 : vector<16x128xf32>
      %cst_23 = arith.constant 1.000000e+00 : f32
      %35 = vector.broadcast %cst_23 : f32 to vector<16x128xf32>
      %36 = arith.addf %35, %34 : vector<16x128xf32>
      %37 = arith.mulf %31, %36 : vector<16x128xf32>
      %c0_24 = arith.constant 0 : index
      %c0_25 = arith.constant 0 : index
      %38 = vector.load %arg7[%c0_24, %c0_25] : memref<16x128xf32, #tpu.memory_space<vmem>>, vector<16x128xf32>
      tpu.vector_store %arg7[%c0_24, %c0_25], %37 {strides = array<i32>} : memref<16x128xf32, #tpu.memory_space<vmem>>, vector<16x128xf32>,
    } else {
    }
    return
  }
  func.func @transform_0(%arg0: i32, %arg1: i32) -> (i32, i32) {
    %c0_i32 = arith.constant 0 : i32
    %c0_i32_0 = arith.constant 0 : i32
    return %arg0, %c0_i32 : i32, i32
  }
  func.func @transform_1(%arg0: i32, %arg1: i32) -> (i32, i32) {
    %c0_i32 = arith.constant 0 : i32
    %c0_i32_0 = arith.constant 0 : i32
    return %c0_i32, %arg1 : i32, i32
  }
  func.func @transform_2(%arg0: i32, %arg1: i32) -> (i32, i32) {
    %c0_i32 = arith.constant 0 : i32
    %c0_i32_0 = arith.constant 0 : i32
    %c0_i32_1 = arith.constant 0 : i32
    return %c0_i32, %c0_i32_0 : i32, i32
  }
  func.func @transform_3(%arg0: i32, %arg1: i32) -> (i32, i32) {
    %c0_i32 = arith.constant 0 : i32
    %c0_i32_0 = arith.constant 0 : i32
    return %arg1, %c0_i32 : i32, i32
  }
  func.func @transform_4(%arg0: i32, %arg1: i32) -> (i32, i32) {
    %c0_i32 = arith.constant 0 : i32
    %c0_i32_0 = arith.constant 0 : i32
    %c0_i32_1 = arith.constant 0 : i32
    return %c0_i32, %c0_i32_0 : i32, i32
  }
  func.func @transform_5(%arg0: i32, %arg1: i32) -> (i32, i32) {
    %c0_i32 = arith.constant 0 : i32
    %c0_i32_0 = arith.constant 0 : i32
    return %arg0, %c0_i32 : i32, i32
  }
}

</mosaic_0001>

<llo_original>
// kernel: tpu_custom_call.1
$region0: #{tpu_custom_call.1}
  #allocation0 [shape = 'u32[]', space=smem, size = 0x4, offset = 0x4, fixed_abs, tag = 'smem constant byte address 0x4 - core index']
  #allocation1 [shape = 'u32[72,128]{1,0:T(1,128)}', space=vmem, size = 0x9000, scoped, tag = 'internal scratch']
  #allocation2 [shape = 'f32[16,128]{1,0:T(8,128)}', space=vmem, size = 0x2000, scoped, tag = 'scratch operand']
  %s0 = inlined_call_operand.hbm [shape: f32[16,128], index: 0, kind: input, shape index: {}]
  %s1 = inlined_call_operand.hbm [shape: f32[128,256], index: 1, kind: input, shape index: {}]
  %s2 = inlined_call_operand.hbm [shape: f32[1,256], index: 2, kind: input, shape index: {}]
  %s3 = inlined_call_operand.hbm [shape: f32[256,128], index: 3, kind: input, shape index: {}]
  %s4 = inlined_call_operand.vmem [shape: f32[1,128], index: 4, kind: input, shape index: {}]
  %s5 = inlined_call_operand.hbm [shape: f32[16,128], index: 5, kind: output, shape index: {}]
  %s6 = sld [smem:[#allocation0]]
  $region54: #{tpu_custom_call.1} parent=0
    _
  %s8 = ssub.s32 1, %s6
  %s9 = scalar_select 0, %s8, %s6
  $region1: #{tpu_custom_call.1} parent=0
    #allocation3 [shape = 'u8[8192]{0}', space=vmem, size = 0x2000, scoped, tag = 'input window, operand 0, single buffered']
    #allocation4 [shape = 's32[1]{0}', space=sflag, size = 0x4, scoped, tag = 'scoped memory for tpu_custom_call.1']
    #allocation5 [shape = 's32[1]{0}', space=sflag, size = 0x4, scoped, tag = 'scoped memory for tpu_custom_call.1']
    #allocation6 [shape = 'u8[131072]{0}', space=vmem, size = 0x20000, scoped, tag = 'input window, operand 1, single buffered']
    #allocation7 [shape = 's32[1]{0}', space=sflag, size = 0x4, scoped, tag = 'scoped memory for tpu_custom_call.1']
    #allocation8 [shape = 'u8[1024]{0}', space=vmem, size = 0x400, scoped, tag = 'input window, operand 2, single buffered']
    #allocation9 [shape = 'u8[131072]{0}', space=vmem, size = 0x20000, scoped, tag = 'input window, operand 3, single buffered']
    #allocation10 [shape = 's32[1]{0}', space=sflag, size = 0x4, scoped, tag = 'scoped memory for tpu_custom_call.1']
    #allocation11 [shape = 'u8[8192]{0}', space=vmem, size = 0x2000, scoped, tag = 'output window, operand 0, single buffered']
    %10 = vsyncpa [#allocation4], 0
    %11 = vsyncpa [#allocation7], 0
    %12 = vsyncpa [#allocation10], 0
    %13 = vsyncpa [#allocation5], 0
    // Predicated region
    $region2: #{tpu_custom_call.1} parent=1 // pred_check
      _
    $region3: #{tpu_custom_call.1} parent=1 // pred_check_branch
      %15 = sbr.rel (0) target = $region5
    $region4: #{tpu_custom_call.1} parent=1 // pred_region
      %17 = vsyncadd [#allocation4], 0
      %s18 = sshll.u32 %s0, 4
      %s19 = int_to_ptr.hbm [resolvable:$true] %s18
      %s20 = sshll.u32 [#allocation3], 4
      %s21 = int_to_ptr.vmem [resolvable:$true] %s20
      %26 = dma.hbm_to_vmem [thread:$0]  %s19, 256, %s21, [#allocation4], 128, 128, 8
    $region5: #{tpu_custom_call.1} parent=1 // pred_fallthru
      _
    // Predicated region
    $region6: #{tpu_custom_call.1} parent=1 // pred_check
      _
    $region7: #{tpu_custom_call.1} parent=1 // pred_check_branch
      %28 = sbr.rel (0) target = $region9
    $region8: #{tpu_custom_call.1} parent=1 // pred_region
      %30 = vsyncadd [#allocation7], 0
      %s31 = sshll.u32 %s1, 4
      %s32 = int_to_ptr.hbm [resolvable:$true] %s31
      %s33 = sshll.u32 [#allocation6], 4
      %s34 = int_to_ptr.vmem [resolvable:$true] %s33
      %39 = dma.hbm_to_vmem [thread:$0]  %s32, 4096, %s34, [#allocation7], 256, 256, 16
    $region9: #{tpu_custom_call.1} parent=1 // pred_fallthru
      _
    // Predicated region
    $region10: #{tpu_custom_call.1} parent=1 // pred_check
      _
    $region11: #{tpu_custom_call.1} parent=1 // pred_check_branch
      %41 = sbr.rel (0) target = $region13
    $region12: #{tpu_custom_call.1} parent=1 // pred_region
      %43 = vsyncadd [#allocation7], 0
      %s45 = sshll.u32 %s2, 4
      %s46 = int_to_ptr.hbm [resolvable:$true] %s45
      %s47 = sshll.u32 [#allocation8], 4
      %s48 = int_to_ptr.vmem [resolvable:$true] %s47
      %50 = dma.hbm_to_vmem [thread:$0]  %s46, 32, %s48, [#allocation7]
    $region13: #{tpu_custom_call.1} parent=1 // pred_fallthru
      _
    // Predicated region
    $region14: #{tpu_custom_call.1} parent=1 // pred_check
      _
    $region15: #{tpu_custom_call.1} parent=1 // pred_check_branch
      %52 = sbr.rel (0) target = $region17
    $region16: #{tpu_custom_call.1} parent=1 // pred_region
      %54 = vsyncadd [#allocation10], 0
      %s55 = sshll.u32 %s3, 4
      %s56 = int_to_ptr.hbm [resolvable:$true] %s55
      %s57 = sshll.u32 [#allocation9], 4
      %s58 = int_to_ptr.vmem [resolvable:$true] %s57
      %63 = dma.hbm_to_vmem [thread:$0]  %s56, 4096, %s58, [#allocation10], 128, 128, 8
    $region17: #{tpu_custom_call.1} parent=1 // pred_fallthru
      _
    // Predicated region
    $region18: #{tpu_custom_call.1} parent=1 // pred_check
      _
    $region19: #{tpu_custom_call.1} parent=1 // pred_check_branch
      %65 = sbr.rel (0) target = $region21
    $region20: #{tpu_custom_call.1} parent=1 // pred_region
      _
    $region21: #{tpu_custom_call.1} parent=1 // pred_fallthru
      _
    // Predicated region
    $region22: #{tpu_custom_call.1} parent=1 // pred_check
      _
    $region23: #{tpu_custom_call.1} parent=1 // pred_check_branch
      %67 = sbr.rel (0) target = $region25
    $region24: #{tpu_custom_call.1} parent=1 // pred_region
      %69 = dma.done [#allocation4], 256
    $region25: #{tpu_custom_call.1} parent=1 // pred_fallthru
      _
    // Predicated region
    $region26: #{tpu_custom_call.1} parent=1 // pred_check
      _
    $region27: #{tpu_custom_call.1} parent=1 // pred_check_branch
      %71 = sbr.rel (0) target = $region29
    $region28: #{tpu_custom_call.1} parent=1 // pred_region
      %73 = dma.done [#allocation7], 4096
    $region29: #{tpu_custom_call.1} parent=1 // pred_fallthru
      _
    // Predicated region
    $region30: #{tpu_custom_call.1} parent=1 // pred_check
      _
    $region31: #{tpu_custom_call.1} parent=1 // pred_check_branch
      %75 = sbr.rel (0) target = $region33
    $region32: #{tpu_custom_call.1} parent=1 // pred_region
      %77 = dma.done [#allocation7], 32
    $region33: #{tpu_custom_call.1} parent=1 // pred_fallthru
      _
    // Predicated region
    $region34: #{tpu_custom_call.1} parent=1 // pred_check
      _
    $region35: #{tpu_custom_call.1} parent=1 // pred_check_branch
      %79 = sbr.rel (0) target = $region37
    $region36: #{tpu_custom_call.1} parent=1 // pred_region
      %81 = dma.done [#allocation10], 4096
    $region37: #{tpu_custom_call.1} parent=1 // pred_fallthru
      _
    %p82 = scmp.eq.s32.totalorder 0, 0
    // Predicated region
    $region38: #{tpu_custom_call.1} parent=1 // pred_check
      %p83 = pneg %p82
    $region39: #{tpu_custom_call.1} parent=1 // pred_check_branch
      %85 = sbr.rel (%p83) target = $region41
    $region40: #{tpu_custom_call.1} parent=1 // pred_region
      %86 = vst [vmem:[#allocation2] sm:$0xff] 0.0
      %87 = vst [vmem:[#allocation2 + $0x8] sm:$0xff] 0.0
    $region41: #{tpu_custom_call.1} parent=1 // pred_fallthru
      _
    %v88 = vld [vmem:[#allocation3] sm:$0xff]
    %v89 = vld [vmem:[#allocation3 + $0x8] sm:$0xff]
    %v90 = vld [vmem:[#allocation6] sm:$0xff]
    %v91 = vld [vmem:[#allocation6 + $0x8] sm:$0xff]
    %v92 = vld [vmem:[#allocation6 + $0x10] sm:$0xff]
    %v93 = vld [vmem:[#allocation6 + $0x18] sm:$0xff]
    %v94 = vld [vmem:[#allocation6 + $0x20] sm:$0xff]
    %v95 = vld [vmem:[#allocation6 + $0x28] sm:$0xff]
    %v96 = vld [vmem:[#allocation6 + $0x30] sm:$0xff]
    %v97 = vld [vmem:[#allocation6 + $0x38] sm:$0xff]
    %v98 = vld [vmem:[#allocation6 + $0x40] sm:$0xff]
    %v99 = vld [vmem:[#allocation6 + $0x48] sm:$0xff]
    %v100 = vld [vmem:[#allocation6 + $0x50] sm:$0xff]
    %v101 = vld [vmem:[#allocation6 + $0x58] sm:$0xff]
    %v102 = vld [vmem:[#allocation6 + $0x60] sm:$0xff]
    %v103 = vld [vmem:[#allocation6 + $0x68] sm:$0xff]
    %v104 = vld [vmem:[#allocation6 + $0x70] sm:$0xff]
    %v105 = vld [vmem:[#allocation6 + $0x78] sm:$0xff]
    %v106 = vld [vmem:[#allocation6 + $0x80] sm:$0xff]
    %v107 = vld [vmem:[#allocation6 + $0x88] sm:$0xff]
    %v108 = vld [vmem:[#allocation6 + $0x90] sm:$0xff]
    %v109 = vld [vmem:[#allocation6 + $0x98] sm:$0xff]
    %v110 = vld [vmem:[#allocation6 + $0xa0] sm:$0xff]
    %v111 = vld [vmem:[#allocation6 + $0xa8] sm:$0xff]
    %v112 = vld [vmem:[#allocation6 + $0xb0] sm:$0xff]
    %v113 = vld [vmem:[#allocation6 + $0xb8] sm:$0xff]
    %v114 = vld [vmem:[#allocation6 + $0xc0] sm:$0xff]
    %v115 = vld [vmem:[#allocation6 + $0xc8] sm:$0xff]
    %v116 = vld [vmem:[#allocation6 + $0xd0] sm:$0xff]
    %v117 = vld [vmem:[#allocation6 + $0xd8] sm:$0xff]
    %v118 = vld [vmem:[#allocation6 + $0xe0] sm:$0xff]
    %v119 = vld [vmem:[#allocation6 + $0xe8] sm:$0xff]
    %v120 = vld [vmem:[#allocation6 + $0xf0] sm:$0xff]
    %v121 = vld [vmem:[#allocation6 + $0xf8] sm:$0xff]
    %s122 = smul.u32 0, 2
    %s123 = scalar_lea.vmem [#allocation8], %s122
    %v124 = vld [vmem:[%s123] sm:$0x3]
    %v126 = vperm.slane %v124, 0
    %v127 = vperm.slane %v124, 1
    %130 = vmatpush.msra.mxu0 %v120
    %131 = vmatpush.msra.mxu0 %v118
    %132 = vmatpush.msra.mxu0 %v116
    %133 = vmatpush.msra.mxu0 %v114
    %134 = vmatpush.msra.mxu0 %v112
    %135 = vmatpush.msra.mxu0 %v110
    %136 = vmatpush.msra.mxu0 %v108
    %137 = vmatpush.msra.mxu0 %v106
    %138 = vmatpush.msra.mxu0 %v104
    %139 = vmatpush.msra.mxu0 %v102
    %140 = vmatpush.msra.mxu0 %v100
    %141 = vmatpush.msra.mxu0 %v98
    %142 = vmatpush.msra.mxu0 %v96
    %143 = vmatpush.msra.mxu0 %v94
    %144 = vmatpush.msra.mxu0 %v92
    %145 = vmatpush.msra.mxu0 %v90
    %146 = vmatmul.f32.gmra.mxu0 %v88
    %v147 = vpop.f32.mrf.mxu0
    %v148 = vadd.f32 %v126, %v147
    %149 = vmatmul.f32.gmra.mxu0 %v89
    %v150 = vpop.f32.mrf.mxu0
    %v151 = vadd.f32 %v126, %v150
    %152 = vdwg.mxu0
    %153 = vmatpush.msra.mxu0 %v121
    %154 = vmatpush.msra.mxu0 %v119
    %155 = vmatpush.msra.mxu0 %v117
    %156 = vmatpush.msra.mxu0 %v115
    %157 = vmatpush.msra.mxu0 %v113
    %158 = vmatpush.msra.mxu0 %v111
    %159 = vmatpush.msra.mxu0 %v109
    %160 = vmatpush.msra.mxu0 %v107
    %161 = vmatpush.msra.mxu0 %v105
    %162 = vmatpush.msra.mxu0 %v103
    %163 = vmatpush.msra.mxu0 %v101
    %164 = vmatpush.msra.mxu0 %v99
    %165 = vmatpush.msra.mxu0 %v97
    %166 = vmatpush.msra.mxu0 %v95
    %167 = vmatpush.msra.mxu0 %v93
    %168 = vmatpush.msra.mxu0 %v91
    %169 = vmatmul.f32.gmra.mxu0 %v88
    %v170 = vpop.f32.mrf.mxu0
    %v171 = vadd.f32 %v127, %v170
    %172 = vmatmul.f32.gmra.mxu0 %v89
    %v173 = vpop.f32.mrf.mxu0
    %v174 = vadd.f32 %v127, %v173
    %175 = vdwg.mxu0
    %v176 = vmul.f32 %v148, 0.5
    %v177 = vmul.f32 %v171, 0.5
    %v178 = vmul.f32 %v151, 0.5
    %v179 = vmul.f32 %v174, 0.5
    %v180 = vmul.f32 %v148, 0.70710677
    %v181 = vmul.f32 %v171, 0.70710677
    %v182 = vmul.f32 %v151, 0.70710677
    %v183 = vmul.f32 %v174, 0.70710677
    %v184 = vmul.f32 %v180, %v180
    %v185 = vmin.f32 16.0, %v184
    %v186 = vmul.f32 %v185, 2.1237322e-06
    %v187 = vadd.f32 %v186, 0.00028619796
    %v188 = vmul.f32 %v185, %v187
    %v189 = vadd.f32 %v188, 0.0036580483
    %v190 = vmul.f32 %v185, %v189
    %v191 = vadd.f32 %v190, 0.05243302
    %v192 = vmul.f32 %v185, %v191
    %v193 = vadd.f32 %v192, 0.18741608
    %v194 = vmul.f32 %v185, %v193
    %v195 = vadd.f32 %v194, 1.1283791
    %v196 = vmul.f32 %v180, %v195
    %v197 = vmul.f32 %v185, 3.8918573e-05
    %v198 = vadd.f32 %v197, 0.001143296
    %v199 = vmul.f32 %v185, %v198
    %v200 = vadd.f32 %v199, 0.014752088
    %v201 = vmul.f32 %v185, %v200
    %v202 = vadd.f32 %v201, 0.112945676
    %v203 = vmul.f32 %v185, %v202
    %v204 = vadd.f32 %v203, 0.4994258
    %v205 = vmul.f32 %v185, %v204
    %v206 = vadd.f32 %v205, 1.0
    %v207 = vrcp.pop %v206
    %v208 = vmul.f32 %v206, %v207
    %v209 = vsub.f32 1.0, %v208
    %v210 = vmul.f32 %v207, %v209
    %v211 = vadd.f32 %v207, %v210
    %vm212 = vweird.f32 %v206
    %vm213 = vweird.f32 %v207
    %vm214 = vmor %vm212, %vm213
    %v215 = vsel %vm214, %v207, %v211
    %v216 = vand.u32 2147483647, %v206
    %vm217 = vcmp.eq.f32.partialorder %v216, 8.507059e+37
    %v218 = vand.u32 %v206, 2147483648
    %v219 = vor.u32 1.1754944e-38, %v218
    %v220 = vsel %vm217, %v219, %v215
    %v221 = vmul.f32 %v196, %v220
    %v222 = vmin.f32 %v221, 1.0
    %v223 = vmax.f32 %v222, -1.0
    %v224 = vmul.f32 %v181, %v181
    %v225 = vmin.f32 16.0, %v224
    %v226 = vmul.f32 %v225, 2.1237322e-06
    %v227 = vadd.f32 %v226, 0.00028619796
    %v228 = vmul.f32 %v225, %v227
    %v229 = vadd.f32 %v228, 0.0036580483
    %v230 = vmul.f32 %v225, %v229
    %v231 = vadd.f32 %v230, 0.05243302
    %v232 = vmul.f32 %v225, %v231
    %v233 = vadd.f32 %v232, 0.18741608
    %v234 = vmul.f32 %v225, %v233
    %v235 = vadd.f32 %v234, 1.1283791
    %v236 = vmul.f32 %v181, %v235
    %v237 = vmul.f32 %v225, 3.8918573e-05
    %v238 = vadd.f32 %v237, 0.001143296
    %v239 = vmul.f32 %v225, %v238
    %v240 = vadd.f32 %v239, 0.014752088
    %v241 = vmul.f32 %v225, %v240
    %v242 = vadd.f32 %v241, 0.112945676
    %v243 = vmul.f32 %v225, %v242
    %v244 = vadd.f32 %v243, 0.4994258
    %v245 = vmul.f32 %v225, %v244
    %v246 = vadd.f32 %v245, 1.0
    %v247 = vrcp.pop %v246
    %v248 = vmul.f32 %v246, %v247
    %v249 = vsub.f32 1.0, %v248
    %v250 = vmul.f32 %v247, %v249
    %v251 = vadd.f32 %v247, %v250
    %vm252 = vweird.f32 %v246
    %vm253 = vweird.f32 %v247
    %vm254 = vmor %vm252, %vm253
    %v255 = vsel %vm254, %v247, %v251
    %v256 = vand.u32 2147483647, %v246
    %vm257 = vcmp.eq.f32.partialorder %v256, 8.507059e+37
    %v258 = vand.u32 %v246, 2147483648
    %v259 = vor.u32 1.1754944e-38, %v258
    %v260 = vsel %vm257, %v259, %v255
    %v261 = vmul.f32 %v236, %v260
    %v262 = vmin.f32 %v261, 1.0
    %v263 = vmax.f32 %v262, -1.0
    %v264 = vmul.f32 %v182, %v182
    %v265 = vmin.f32 16.0, %v264
    %v266 = vmul.f32 %v265, 2.1237322e-06
    %v267 = vadd.f32 %v266, 0.00028619796
    %v268 = vmul.f32 %v265, %v267
    %v269 = vadd.f32 %v268, 0.0036580483
    %v270 = vmul.f32 %v265, %v269
    %v271 = vadd.f32 %v270, 0.05243302
    %v272 = vmul.f32 %v265, %v271
    %v273 = vadd.f32 %v272, 0.18741608
    %v274 = vmul.f32 %v265, %v273
    %v275 = vadd.f32 %v274, 1.1283791
    %v276 = vmul.f32 %v182, %v275
    %v277 = vmul.f32 %v265, 3.8918573e-05
    %v278 = vadd.f32 %v277, 0.001143296
    %v279 = vmul.f32 %v265, %v278
    %v280 = vadd.f32 %v279, 0.014752088
    %v281 = vmul.f32 %v265, %v280
    %v282 = vadd.f32 %v281, 0.112945676
    %v283 = vmul.f32 %v265, %v282
    %v284 = vadd.f32 %v283, 0.4994258
    %v285 = vmul.f32 %v265, %v284
    %v286 = vadd.f32 %v285, 1.0
    %v287 = vrcp.pop %v286
    %v288 = vmul.f32 %v286, %v287
    %v289 = vsub.f32 1.0, %v288
    %v290 = vmul.f32 %v287, %v289
    %v291 = vadd.f32 %v287, %v290
    %vm292 = vweird.f32 %v286
    %vm293 = vweird.f32 %v287
    %vm294 = vmor %vm292, %vm293
    %v295 = vsel %vm294, %v287, %v291
    %v296 = vand.u32 2147483647, %v286
    %vm297 = vcmp.eq.f32.partialorder %v296, 8.507059e+37
    %v298 = vand.u32 %v286, 2147483648
    %v299 = vor.u32 1.1754944e-38, %v298
    %v300 = vsel %vm297, %v299, %v295
    %v301 = vmul.f32 %v276, %v300
    %v302 = vmin.f32 %v301, 1.0
    %v303 = vmax.f32 %v302, -1.0
    %v304 = vmul.f32 %v183, %v183
    %v305 = vmin.f32 16.0, %v304
    %v306 = vmul.f32 %v305, 2.1237322e-06
    %v307 = vadd.f32 %v306, 0.00028619796
    %v308 = vmul.f32 %v305, %v307
    %v309 = vadd.f32 %v308, 0.0036580483
    %v310 = vmul.f32 %v305, %v309
    %v311 = vadd.f32 %v310, 0.05243302
    %v312 = vmul.f32 %v305, %v311
    %v313 = vadd.f32 %v312, 0.18741608
    %v314 = vmul.f32 %v305, %v313
    %v315 = vadd.f32 %v314, 1.1283791
    %v316 = vmul.f32 %v183, %v315
    %v317 = vmul.f32 %v305, 3.8918573e-05
    %v318 = vadd.f32 %v317, 0.001143296
    %v319 = vmul.f32 %v305, %v318
    %v320 = vadd.f32 %v319, 0.014752088
    %v321 = vmul.f32 %v305, %v320
    %v322 = vadd.f32 %v321, 0.112945676
    %v323 = vmul.f32 %v305, %v322
    %v324 = vadd.f32 %v323, 0.4994258
    %v325 = vmul.f32 %v305, %v324
    %v326 = vadd.f32 %v325, 1.0
    %v327 = vrcp.pop %v326
    %v328 = vmul.f32 %v326, %v327
    %v329 = vsub.f32 1.0, %v328
    %v330 = vmul.f32 %v327, %v329
    %v331 = vadd.f32 %v327, %v330
    %vm332 = vweird.f32 %v326
    %vm333 = vweird.f32 %v327
    %vm334 = vmor %vm332, %vm333
    %v335 = vsel %vm334, %v327, %v331
    %v336 = vand.u32 2147483647, %v326
    %vm337 = vcmp.eq.f32.partialorder %v336, 8.507059e+37
    %v338 = vand.u32 %v326, 2147483648
    %v339 = vor.u32 1.1754944e-38, %v338
    %v340 = vsel %vm337, %v339, %v335
    %v341 = vmul.f32 %v316, %v340
    %v342 = vmin.f32 %v341, 1.0
    %v343 = vmax.f32 %v342, -1.0
    %v344 = vadd.f32 %v223, 1.0
    %v345 = vadd.f32 %v263, 1.0
    %v346 = vadd.f32 %v303, 1.0
    %v347 = vadd.f32 %v343, 1.0
    %v348 = vmul.f32 %v176, %v344
    %v349 = vmul.f32 %v177, %v345
    %v350 = vmul.f32 %v178, %v346
    %v351 = vmul.f32 %v179, %v347
    %v352 = vld [vmem:[#allocation2] sm:$0xff]
    %v353 = vld [vmem:[#allocation2 + $0x8] sm:$0xff]
    %v354 = vld [vmem:[#allocation9] sm:$0xff]
    %v355 = vld [vmem:[#allocation9 + $0x8] sm:$0xff]
    %v356 = vld [vmem:[#allocation9 + $0x10] sm:$0xff]
    %v357 = vld [vmem:[#allocation9 + $0x18] sm:$0xff]
    %v358 = vld [vmem:[#allocation9 + $0x20] sm:$0xff]
    %v359 = vld [vmem:[#allocation9 + $0x28] sm:$0xff]
    %v360 = vld [vmem:[#allocation9 + $0x30] sm:$0xff]
    %v361 = vld [vmem:[#allocation9 + $0x38] sm:$0xff]
    %v362 = vld [vmem:[#allocation9 + $0x40] sm:$0xff]
    %v363 = vld [vmem:[#allocation9 + $0x48] sm:$0xff]
    %v364 = vld [vmem:[#allocation9 + $0x50] sm:$0xff]
    %v365 = vld [vmem:[#allocation9 + $0x58] sm:$0xff]
    %v366 = vld [vmem:[#allocation9 + $0x60] sm:$0xff]
    %v367 = vld [vmem:[#allocation9 + $0x68] sm:$0xff]
    %v368 = vld [vmem:[#allocation9 + $0x70] sm:$0xff]
    %v369 = vld [vmem:[#allocation9 + $0x78] sm:$0xff]
    %v370 = vld [vmem:[#allocation9 + $0x80] sm:$0xff]
    %v371 = vld [vmem:[#allocation9 + $0x88] sm:$0xff]
    %v372 = vld [vmem:[#allocation9 + $0x90] sm:$0xff]
    %v373 = vld [vmem:[#allocation9 + $0x98] sm:$0xff]
    %v374 = vld [vmem:[#allocation9 + $0xa0] sm:$0xff]
    %v375 = vld [vmem:[#allocation9 + $0xa8] sm:$0xff]
    %v376 = vld [vmem:[#allocation9 + $0xb0] sm:$0xff]
    %v377 = vld [vmem:[#allocation9 + $0xb8] sm:$0xff]
    %v378 = vld [vmem:[#allocation9 + $0xc0] sm:$0xff]
    %v379 = vld [vmem:[#allocation9 + $0xc8] sm:$0xff]
    %v380 = vld [vmem:[#allocation9 + $0xd0] sm:$0xff]
    %v381 = vld [vmem:[#allocation9 + $0xd8] sm:$0xff]
    %v382 = vld [vmem:[#allocation9 + $0xe0] sm:$0xff]
    %v383 = vld [vmem:[#allocation9 + $0xe8] sm:$0xff]
    %v384 = vld [vmem:[#allocation9 + $0xf0] sm:$0xff]
    %v385 = vld [vmem:[#allocation9 + $0xf8] sm:$0xff]
    %386 = vmatpush.msra.mxu0 %v369
    %387 = vmatpush.msra.mxu0 %v368
    %388 = vmatpush.msra.mxu0 %v367
    %389 = vmatpush.msra.mxu0 %v366
    %390 = vmatpush.msra.mxu0 %v365
    %391 = vmatpush.msra.mxu0 %v364
    %392 = vmatpush.msra.mxu0 %v363
    %393 = vmatpush.msra.mxu0 %v362
    %394 = vmatpush.msra.mxu0 %v361
    %395 = vmatpush.msra.mxu0 %v360
    %396 = vmatpush.msra.mxu0 %v359
    %397 = vmatpush.msra.mxu0 %v358
    %398 = vmatpush.msra.mxu0 %v357
    %399 = vmatpush.msra.mxu0 %v356
    %400 = vmatpush.msra.mxu0 %v355
    %401 = vmatpush.msra.mxu0 %v354
    %402 = vmatmul.f32.gmra.mxu0 %v348
    %v403 = vpop.f32.mrf.mxu0
    %v404 = vadd.f32 0.0, %v403
    %405 = vmatmul.f32.gmra.mxu0 %v350
    %v406 = vpop.f32.mrf.mxu0
    %v407 = vadd.f32 0.0, %v406
    %408 = vdwg.mxu0
    %409 = vmatpush.msra.mxu0 %v385
    %410 = vmatpush.msra.mxu0 %v384
    %411 = vmatpush.msra.mxu0 %v383
    %412 = vmatpush.msra.mxu0 %v382
    %413 = vmatpush.msra.mxu0 %v381
    %414 = vmatpush.msra.mxu0 %v380
    %415 = vmatpush.msra.mxu0 %v379
    %416 = vmatpush.msra.mxu0 %v378
    %417 = vmatpush.msra.mxu0 %v377
    %418 = vmatpush.msra.mxu0 %v376
    %419 = vmatpush.msra.mxu0 %v375
    %420 = vmatpush.msra.mxu0 %v374
    %421 = vmatpush.msra.mxu0 %v373
    %422 = vmatpush.msra.mxu0 %v372
    %423 = vmatpush.msra.mxu0 %v371
    %424 = vmatpush.msra.mxu0 %v370
    %425 = vmatmul.f32.gmra.mxu0 %v349
    %v426 = vpop.f32.mrf.mxu0
    %v427 = vadd.f32 %v404, %v426
    %428 = vmatmul.f32.gmra.mxu0 %v351
    %v429 = vpop.f32.mrf.mxu0
    %v430 = vadd.f32 %v407, %v429
    %431 = vdwg.mxu0
    %v432 = vadd.f32 %v352, %v427
    %v433 = vadd.f32 %v353, %v430
    %434 = vst [vmem:[#allocation2] sm:$0xff] %v432
    %435 = vst [vmem:[#allocation2 + $0x8] sm:$0xff] %v433
    // Predicated region
    $region42: #{tpu_custom_call.1} parent=1 // pred_check
      %p436 = pneg %p82
    $region43: #{tpu_custom_call.1} parent=1 // pred_check_branch
      %438 = sbr.rel (%p436) target = $region45
    $region44: #{tpu_custom_call.1} parent=1 // pred_region
      %v439 = vld [vmem:[#allocation2] sm:$0xff]
      %v440 = vld [vmem:[#allocation2 + $0x8] sm:$0xff]
      %v441 = vld [vmem:[%s4] sm:$0x1]
      %v443 = vperm.slane %v441, 0
      %v445 = vadd.f32 %v439, %v443
      %v446 = vadd.f32 %v440, %v443
      %v447 = vmul.f32 %v445, 0.5
      %v448 = vmul.f32 %v446, 0.5
      %v449 = vmul.f32 %v445, 0.70710677
      %v450 = vmul.f32 %v446, 0.70710677
      %v451 = vmul.f32 %v449, %v449
      %v452 = vmin.f32 16.0, %v451
      %v453 = vmul.f32 %v452, 2.1237322e-06
      %v454 = vadd.f32 %v453, 0.00028619796
      %v455 = vmul.f32 %v452, %v454
      %v456 = vadd.f32 %v455, 0.0036580483
      %v457 = vmul.f32 %v452, %v456
      %v458 = vadd.f32 %v457, 0.05243302
      %v459 = vmul.f32 %v452, %v458
      %v460 = vadd.f32 %v459, 0.18741608
      %v461 = vmul.f32 %v452, %v460
      %v462 = vadd.f32 %v461, 1.1283791
      %v463 = vmul.f32 %v449, %v462
      %v464 = vmul.f32 %v452, 3.8918573e-05
      %v465 = vadd.f32 %v464, 0.001143296
      %v466 = vmul.f32 %v452, %v465
      %v467 = vadd.f32 %v466, 0.014752088
      %v468 = vmul.f32 %v452, %v467
      %v469 = vadd.f32 %v468, 0.112945676
      %v470 = vmul.f32 %v452, %v469
      %v471 = vadd.f32 %v470, 0.4994258
      %v472 = vmul.f32 %v452, %v471
      %v473 = vadd.f32 %v472, 1.0
      %v474 = vrcp.pop %v473
      %v475 = vmul.f32 %v473, %v474
      %v476 = vsub.f32 1.0, %v475
      %v477 = vmul.f32 %v474, %v476
      %v478 = vadd.f32 %v474, %v477
      %vm479 = vweird.f32 %v473
      %vm480 = vweird.f32 %v474
      %vm481 = vmor %vm479, %vm480
      %v482 = vsel %vm481, %v474, %v478
      %v483 = vand.u32 2147483647, %v473
      %vm484 = vcmp.eq.f32.partialorder %v483, 8.507059e+37
      %v485 = vand.u32 %v473, 2147483648
      %v486 = vor.u32 1.1754944e-38, %v485
      %v487 = vsel %vm484, %v486, %v482
      %v488 = vmul.f32 %v463, %v487
      %v489 = vmin.f32 %v488, 1.0
      %v490 = vmax.f32 %v489, -1.0
      %v491 = vmul.f32 %v450, %v450
      %v492 = vmin.f32 16.0, %v491
      %v493 = vmul.f32 %v492, 2.1237322e-06
      %v494 = vadd.f32 %v493, 0.00028619796
      %v495 = vmul.f32 %v492, %v494
      %v496 = vadd.f32 %v495, 0.0036580483
      %v497 = vmul.f32 %v492, %v496
      %v498 = vadd.f32 %v497, 0.05243302
      %v499 = vmul.f32 %v492, %v498
      %v500 = vadd.f32 %v499, 0.18741608
      %v501 = vmul.f32 %v492, %v500
      %v502 = vadd.f32 %v501, 1.1283791
      %v503 = vmul.f32 %v450, %v502
      %v504 = vmul.f32 %v492, 3.8918573e-05
      %v505 = vadd.f32 %v504, 0.001143296
      %v506 = vmul.f32 %v492, %v505
      %v507 = vadd.f32 %v506, 0.014752088
      %v508 = vmul.f32 %v492, %v507
      %v509 = vadd.f32 %v508, 0.112945676
      %v510 = vmul.f32 %v492, %v509
      %v511 = vadd.f32 %v510, 0.4994258
      %v512 = vmul.f32 %v492, %v511
      %v513 = vadd.f32 %v512, 1.0
      %v514 = vrcp.pop %v513
      %v515 = vmul.f32 %v513, %v514
      %v516 = vsub.f32 1.0, %v515
      %v517 = vmul.f32 %v514, %v516
      %v518 = vadd.f32 %v514, %v517
      %vm519 = vweird.f32 %v513
      %vm520 = vweird.f32 %v514
      %vm521 = vmor %vm519, %vm520
      %v522 = vsel %vm521, %v514, %v518
      %v523 = vand.u32 2147483647, %v513
      %vm524 = vcmp.eq.f32.partialorder %v523, 8.507059e+37
      %v525 = vand.u32 %v513, 2147483648
      %v526 = vor.u32 1.1754944e-38, %v525
      %v527 = vsel %vm524, %v526, %v522
      %v528 = vmul.f32 %v503, %v527
      %v529 = vmin.f32 %v528, 1.0
      %v530 = vmax.f32 %v529, -1.0
      %v531 = vadd.f32 %v490, 1.0
      %v532 = vadd.f32 %v530, 1.0
      %v533 = vmul.f32 %v447, %v531
      %v534 = vmul.f32 %v448, %v532
      %535 = vst [vmem:[#allocation11] sm:$0xff] %v533
      %536 = vst [vmem:[#allocation11 + $0x8] sm:$0xff] %v534
    $region45: #{tpu_custom_call.1} parent=1 // pred_fallthru
      _
    // Predicated region
    $region46: #{tpu_custom_call.1} parent=1 // pred_check
      _
    $region47: #{tpu_custom_call.1} parent=1 // pred_check_branch
      %538 = sbr.rel (0) target = $region49
    $region48: #{tpu_custom_call.1} parent=1 // pred_region
      %540 = vsyncadd [#allocation5], 0
      %s541 = sshll.u32 [#allocation11], 4
      %s542 = int_to_ptr.vmem [resolvable:$true] %s541
      %s543 = sshll.u32 %s5, 4
      %s544 = int_to_ptr.hbm [resolvable:$true] %s543
      %549 = dma.vmem_to_hbm [thread:$0]  %s542, 256, %s544, [#allocation5], 128, 128, 8
    $region49: #{tpu_custom_call.1} parent=1 // pred_fallthru
      _
    // Predicated region
    $region50: #{tpu_custom_call.1} parent=1 // pred_check
      _
    $region51: #{tpu_custom_call.1} parent=1 // pred_check_branch
      %551 = sbr.rel (0) target = $region53
    $region52: #{tpu_custom_call.1} parent=1 // pred_region
      %553 = dma.done [#allocation5], 256
    $region53: #{tpu_custom_call.1} parent=1 // pred_fallthru
      _
    %554 = vsyncpa [#allocation4], 1
    %555 = vsyncpa [#allocation7], 1
    %556 = vsyncpa [#allocation10], 1
    %557 = vsyncpa [#allocation5], 1

</llo_original>
